<compile_context>
chip_gen: v5e
topology: v5e:2x2
jax: 0.10.0
libtpu: 0.0.40
codegen_flags: <defaults>
</compile_context>

<pallas_src>
import jax
import jax.numpy as jnp
from jax.experimental import pallas as pl
from jax.experimental.pallas import tpu as pltpu  # noqa: F401  (TPU backend)


# ----------------------------------------------------------------------------
# Single fused kernel: conv(im2col matmul) + bias + ReLU + GAP + MLP.
# Everything fits comfortably in VMEM (<150 KiB total), so grid=() and all
# operands are whole-array VMEM blocks.
# ----------------------------------------------------------------------------
def fused_encoder_kernel(patch_ref, wconv_ref, bconv_ref, pool_ref,
                         w1_ref, b1_ref, w2_ref, b2_ref, out_ref):
    # patch_ref: (N*P, K)       bf16  -- im2col patches, batch folded into rows
    # wconv_ref: (K, Cout)      bf16
    # bconv_ref: (1, Cout)      f32
    # pool_ref:  (N, N*P)       f32   -- block-diagonal 1/P (MXU global avg pool)
    # w1_ref:    (Cout, hidden) bf16 ; b1_ref: (1, hidden) f32
    # w2_ref:    (hidden, feat) bf16 ; b2_ref: (1, feat)   f32
    # out_ref:   (N, feat)      f32

    # conv-as-matmul on the MXU (bf16 operands, f32 accumulate) + bias + ReLU.
    y = jnp.dot(patch_ref[...], wconv_ref[...],
                preferred_element_type=jnp.float32)            # (N*P, Cout)
    y = jnp.maximum(y + bconv_ref[...], 0.0)                   # VPU

    # Global average pool as an MXU matmul, kept in f32 so the P-term mean
    # does not lose precision.
    pooled = jnp.dot(pool_ref[...], y,
                     preferred_element_type=jnp.float32)       # (N, Cout)

    # Projection MLP: Linear -> ReLU -> Linear (bf16 matmuls, f32 accumulate).
    h = jnp.dot(pooled.astype(jnp.bfloat16), w1_ref[...],
                preferred_element_type=jnp.float32)            # (N, hidden)
    h = jnp.maximum(h + b1_ref[...], 0.0)
    o = jnp.dot(h.astype(jnp.bfloat16), w2_ref[...],
                preferred_element_type=jnp.float32)            # (N, feat)

    # NOTE: feat=32 < 128 lanes -> masked store; negligible at N=2.  If the
    # batch grows, pad feat to 128 here and slice in the wrapper for a
    # lane-dense unmasked store.
    out_ref[...] = o + b2_ref[...]


def _im2col_3x3_same(x_nhwc):
    """3x3, stride 1, pad 1 patch extraction (plain-JAX glue, bf16)."""
    n, h, w, c = x_nhwc.shape
    xp = jnp.pad(x_nhwc, ((0, 0), (1, 1), (1, 1), (0, 0)))
    cols = []
    for di in range(3):
        for dj in range(3):
            cols.append(xp[:, di:di + h, dj:dj + w, :])
    patches = jnp.concatenate(cols, axis=-1)           # (N, H, W, 9*C)
    return patches.reshape(n * h * w, 9 * c)           # (N*P, K) -- batch folded


def simsiam_encoder_forward(x_nchw, params):
    """Forward pass of the (synthetic) SimSiam encoder.

    x_nchw: (N, Cin, H, W) float32  (PyTorch NCHW convention)
    returns: (N, feat_dim) float32
    """
    w_conv, b_conv, w1, b1, w2, b2 = (
        params["w_conv"], params["b_conv"],
        params["w1"], params["b1"], params["w2"], params["b2"],
    )
    n, cin, h, w = x_nchw.shape
    cout = w_conv.shape[1]
    hidden = w1.shape[1]
    feat = w2.shape[1]
    p = h * w
    k = 9 * cin

    # NCHW -> NHWC (channels last), cast to bf16 so patch glue + DMA bytes halve.
    x_nhwc = jnp.transpose(x_nchw, (0, 2, 3, 1)).astype(jnp.bfloat16)
    patches = _im2col_3x3_same(x_nhwc)                 # (N*P, K) bf16

    # Block-diagonal mean-pooling operator: row b has 1/P over its P rows.
    # Lets global-average-pool ride the MXU instead of a cross-sublane reduce.
    pool = jnp.repeat(jnp.eye(n, dtype=jnp.float32), p, axis=1) / float(p)

    flops = (2 * (n * p) * k * cout          # conv matmul
             + 2 * n * (n * p) * cout        # GAP matmul
             + 2 * n * cout * hidden         # MLP layer 1
             + 2 * n * hidden * feat)        # MLP layer 2
    bytes_accessed = (patches.size * 2 + w_conv.size * 2
                      + w1.size * 2 + w2.size * 2
                      + (b_conv.size + b1.size + b2.size + pool.size
                         + n * feat) * 4)

    feats = pl.pallas_call(
        fused_encoder_kernel,
        out_shape=jax.ShapeDtypeStruct((n, feat), jnp.float32),
        cost_estimate=pl.CostEstimate(
            flops=flops, transcendentals=0, bytes_accessed=bytes_accessed),
    )(patches,
      w_conv.astype(jnp.bfloat16), b_conv, pool,
      w1.astype(jnp.bfloat16), b1,
      w2.astype(jnp.bfloat16), b2)
    return feats


def make_params(key, cin=4, cout=32, hidden=64, feat=32):
    """Deterministic synthetic parameters (shapes follow the encoder above)."""
    k1, k2, k3 = jax.random.split(key, 3)
    # conv weight stored directly in matmul layout (9*Cin, Cout); ordering
    # matches the im2col concat order (di, dj, cin).
    w_conv = jax.random.normal(k1, (9 * cin, cout), jnp.float32) * 0.05
    b_conv = jnp.zeros((1, cout), jnp.float32)
    w1 = jax.random.normal(k2, (cout, hidden), jnp.float32) * 0.1
    b1 = jnp.zeros((1, hidden), jnp.float32)
    w2 = jax.random.normal(k3, (hidden, feat), jnp.float32) * 0.1
    b2 = jnp.zeros((1, feat), jnp.float32)
    return dict(w_conv=w_conv, b_conv=b_conv, w1=w1, b1=b1, w2=w2, b2=b2)


if __name__ == "__main__":
    key = jax.random.PRNGKey(0)
    kx, kp = jax.random.split(key)

    # Small shapes consistent with an image encoder: batch=2, C=4, 16x16.
    x = jax.random.normal(kx, (2, 4, 16, 16), jnp.float32)
    params = make_params(kp)

    fwd = jax.jit(simsiam_encoder_forward)
    out = fwd(x, params)
    out = jax.block_until_ready(out)

    assert out.shape == (2, 32), out.shape
    assert jnp.all(jnp.isfinite(out))
    print("KERNEL_OK")
</pallas_src>

<mosaic_0001>
module attributes {stable_mosaic.version = 11 : i64} {
  func.func @fused_encoder_kernel(%arg0: memref<512x36xbf16, #tpu.memory_space<vmem>>, %arg1: memref<36x32xbf16, #tpu.memory_space<vmem>>, %arg2: memref<1x32xf32, #tpu.memory_space<vmem>>, %arg3: memref<2x512xf32, #tpu.memory_space<vmem>>, %arg4: memref<32x64xbf16, #tpu.memory_space<vmem>>, %arg5: memref<1x64xf32, #tpu.memory_space<vmem>>, %arg6: memref<64x32xbf16, #tpu.memory_space<vmem>>, %arg7: memref<1x32xf32, #tpu.memory_space<vmem>>, %arg8: memref<2x32xf32, #tpu.memory_space<vmem>>) attributes {dimension_semantics = [], scalar_prefetch = 0 : i64, scratch_operands = 0 : i64, tpu.core_type = #tpu.core_type<tc>} {
    %c0 = arith.constant 0 : index
    %c0_0 = arith.constant 0 : index
    %0 = vector.load %arg0[%c0, %c0_0] : memref<512x36xbf16, #tpu.memory_space<vmem>>, vector<512x36xbf16>
    %c0_1 = arith.constant 0 : index
    %c0_2 = arith.constant 0 : index
    %1 = vector.load %arg1[%c0_1, %c0_2] : memref<36x32xbf16, #tpu.memory_space<vmem>>, vector<36x32xbf16>
    %cst = arith.constant dense<0.000000e+00> : vector<512x32xf32>
    %2 = tpu.matmul %0, %1, %cst {dimension_numbers = #tpu.dot_dimension_numbers<[1], [0], [0], [1], [0, 0, 1, 1], [], []>} : vector<512x36xbf16>, vector<36x32xbf16>, vector<512x32xf32> -> vector<512x32xf32>
    %c0_3 = arith.constant 0 : index
    %c0_4 = arith.constant 0 : index
    %3 = vector.load %arg2[%c0_3, %c0_4] : memref<1x32xf32, #tpu.memory_space<vmem>>, vector<1x32xf32>
    %4 = vector.broadcast %3 : vector<1x32xf32> to vector<512x32xf32>
    %5 = arith.addf %2, %4 : vector<512x32xf32>
    %cst_5 = arith.constant 0.000000e+00 : f32
    %6 = vector.broadcast %cst_5 : f32 to vector<512x32xf32>
    %7 = arith.maximumf %5, %6 : vector<512x32xf32>
    %c0_6 = arith.constant 0 : index
    %c0_7 = arith.constant 0 : index
    %8 = vector.load %arg3[%c0_6, %c0_7] : memref<2x512xf32, #tpu.memory_space<vmem>>, vector<2x512xf32>
    %cst_8 = arith.constant dense<0.000000e+00> : vector<2x32xf32>
    %9 = tpu.matmul %8, %7, %cst_8 {dimension_numbers = #tpu.dot_dimension_numbers<[1], [0], [0], [1], [0, 0, 1, 1], [], []>} : vector<2x512xf32>, vector<512x32xf32>, vector<2x32xf32> -> vector<2x32xf32>
    %10 = arith.truncf %9 : vector<2x32xf32> to vector<2x32xbf16>
    %c0_9 = arith.constant 0 : index
    %c0_10 = arith.constant 0 : index
    %11 = vector.load %arg4[%c0_9, %c0_10] : memref<32x64xbf16, #tpu.memory_space<vmem>>, vector<32x64xbf16>
    %cst_11 = arith.constant dense<0.000000e+00> : vector<2x64xf32>
    %12 = tpu.matmul %10, %11, %cst_11 {dimension_numbers = #tpu.dot_dimension_numbers<[1], [0], [0], [1], [0, 0, 1, 1], [], []>} : vector<2x32xbf16>, vector<32x64xbf16>, vector<2x64xf32> -> vector<2x64xf32>
    %c0_12 = arith.constant 0 : index
    %c0_13 = arith.constant 0 : index
    %13 = vector.load %arg5[%c0_12, %c0_13] : memref<1x64xf32, #tpu.memory_space<vmem>>, vector<1x64xf32>
    %14 = vector.broadcast %13 : vector<1x64xf32> to vector<2x64xf32>
    %15 = arith.addf %12, %14 : vector<2x64xf32>
    %cst_14 = arith.constant 0.000000e+00 : f32
    %16 = vector.broadcast %cst_14 : f32 to vector<2x64xf32>
    %17 = arith.maximumf %15, %16 : vector<2x64xf32>
    %18 = arith.truncf %17 : vector<2x64xf32> to vector<2x64xbf16>
    %c0_15 = arith.constant 0 : index
    %c0_16 = arith.constant 0 : index
    %19 = vector.load %arg6[%c0_15, %c0_16] : memref<64x32xbf16, #tpu.memory_space<vmem>>, vector<64x32xbf16>
    %cst_17 = arith.constant dense<0.000000e+00> : vector<2x32xf32>
    %20 = tpu.matmul %18, %19, %cst_17 {dimension_numbers = #tpu.dot_dimension_numbers<[1], [0], [0], [1], [0, 0, 1, 1], [], []>} : vector<2x64xbf16>, vector<64x32xbf16>, vector<2x32xf32> -> vector<2x32xf32>
    %c0_18 = arith.constant 0 : index
    %c0_19 = arith.constant 0 : index
    %21 = vector.load %arg7[%c0_18, %c0_19] : memref<1x32xf32, #tpu.memory_space<vmem>>, vector<1x32xf32>
    %22 = vector.broadcast %21 : vector<1x32xf32> to vector<2x32xf32>
    %23 = arith.addf %20, %22 : vector<2x32xf32>
    %c0_20 = arith.constant 0 : index
    %c0_21 = arith.constant 0 : index
    %24 = vector.load %arg8[%c0_20, %c0_21] : memref<2x32xf32, #tpu.memory_space<vmem>>, vector<2x32xf32>
    tpu.vector_store %arg8[%c0_20, %c0_21], %23 {strides = array<i32>} : memref<2x32xf32, #tpu.memory_space<vmem>>, vector<2x32xf32>,
    return
  }
}

</mosaic_0001>

<llo_original>
// kernel: simsiam_encoder_forward.1
$region0: #{simsiam_encoder_forward.1}
  #allocation0 [shape = 'u32[]', space=smem, size = 0x4, offset = 0x4, fixed_abs, tag = 'smem constant byte address 0x4 - core index']
  #allocation1 [shape = 'u32[72,128]{1,0:T(1,128)}', space=vmem, size = 0x9000, scoped, tag = 'internal scratch']
  %s0 = inlined_call_operand.vmem [shape: bf16[512,36], index: 0, kind: input, shape index: {}]
  %s1 = inlined_call_operand.vmem [shape: bf16[36,32], index: 1, kind: input, shape index: {}]
  %s2 = inlined_call_operand.vmem [shape: f32[1,32], index: 2, kind: input, shape index: {}]
  %s3 = inlined_call_operand.vmem [shape: f32[2,512], index: 3, kind: input, shape index: {}]
  %s4 = inlined_call_operand.vmem [shape: bf16[32,64], index: 4, kind: input, shape index: {}]
  %s5 = inlined_call_operand.vmem [shape: f32[1,64], index: 5, kind: input, shape index: {}]
  %s6 = inlined_call_operand.vmem [shape: bf16[64,32], index: 6, kind: input, shape index: {}]
  %s7 = inlined_call_operand.vmem [shape: f32[1,32], index: 7, kind: input, shape index: {}]
  %s8 = inlined_call_operand.hbm [shape: f32[2,32], index: 8, kind: output, shape index: {}]
  %s9 = sld [smem:[#allocation0]]
  $region42: #{simsiam_encoder_forward.1} parent=0
    _
  %s11 = ssub.s32 1, %s9
  %s12 = scalar_select 0, %s11, %s9
  $region1: #{simsiam_encoder_forward.1} parent=0
    #allocation2 [shape = 'u8[1024]{0}', space=vmem, size = 0x400, scoped, tag = 'output window, operand 0, single buffered']
    #allocation3 [shape = 's32[1]{0}', space=sflag, size = 0x4, scoped, tag = 'scoped memory for simsiam_encoder_forward.1']
    %13 = vsyncpa [#allocation3], 0
    // Predicated region
    $region2: #{simsiam_encoder_forward.1} parent=1 // pred_check
      _
    $region3: #{simsiam_encoder_forward.1} parent=1 // pred_check_branch
      %15 = sbr.rel (0) target = $region5
    $region4: #{simsiam_encoder_forward.1} parent=1 // pred_region
      _
    $region5: #{simsiam_encoder_forward.1} parent=1 // pred_fallthru
      _
    // Predicated region
    $region6: #{simsiam_encoder_forward.1} parent=1 // pred_check
      _
    $region7: #{simsiam_encoder_forward.1} parent=1 // pred_check_branch
      %17 = sbr.rel (0) target = $region9
    $region8: #{simsiam_encoder_forward.1} parent=1 // pred_region
      _
    $region9: #{simsiam_encoder_forward.1} parent=1 // pred_fallthru
      _
    // Predicated region
    $region10: #{simsiam_encoder_forward.1} parent=1 // pred_check
      _
    $region11: #{simsiam_encoder_forward.1} parent=1 // pred_check_branch
      %19 = sbr.rel (0) target = $region13
    $region12: #{simsiam_encoder_forward.1} parent=1 // pred_region
      _
    $region13: #{simsiam_encoder_forward.1} parent=1 // pred_fallthru
      _
    // Predicated region
    $region14: #{simsiam_encoder_forward.1} parent=1 // pred_check
      _
    $region15: #{simsiam_encoder_forward.1} parent=1 // pred_check_branch
      %21 = sbr.rel (0) target = $region17
    $region16: #{simsiam_encoder_forward.1} parent=1 // pred_region
      _
    $region17: #{simsiam_encoder_forward.1} parent=1 // pred_fallthru
      _
    // Predicated region
    $region18: #{simsiam_encoder_forward.1} parent=1 // pred_check
      _
    $region19: #{simsiam_encoder_forward.1} parent=1 // pred_check_branch
      %23 = sbr.rel (0) target = $region21
    $region20: #{simsiam_encoder_forward.1} parent=1 // pred_region
      _
    $region21: #{simsiam_encoder_forward.1} parent=1 // pred_fallthru
      _
    // Predicated region
    $region22: #{simsiam_encoder_forward.1} parent=1 // pred_check
      _
    $region23: #{simsiam_encoder_forward.1} parent=1 // pred_check_branch
      %25 = sbr.rel (0) target = $region25
    $region24: #{simsiam_encoder_forward.1} parent=1 // pred_region
      _
    $region25: #{simsiam_encoder_forward.1} parent=1 // pred_fallthru
      _
    // Predicated region
    $region26: #{simsiam_encoder_forward.1} parent=1 // pred_check
      _
    $region27: #{simsiam_encoder_forward.1} parent=1 // pred_check_branch
      %27 = sbr.rel (0) target = $region29
    $region28: #{simsiam_encoder_forward.1} parent=1 // pred_region
      _
    $region29: #{simsiam_encoder_forward.1} parent=1 // pred_fallthru
      _
    // Predicated region
    $region30: #{simsiam_encoder_forward.1} parent=1 // pred_check
      _
    $region31: #{simsiam_encoder_forward.1} parent=1 // pred_check_branch
      %29 = sbr.rel (0) target = $region33
    $region32: #{simsiam_encoder_forward.1} parent=1 // pred_region
      _
    $region33: #{simsiam_encoder_forward.1} parent=1 // pred_fallthru
      _
    %v31 = vld [vmem:[%s0] sm:$0xf]
    %v32 = vld [vmem:[%s0 + $0x4] sm:$0xf]
    %v33 = vld [vmem:[%s0 + $0x8] sm:$0xf]
    %v34 = vld [vmem:[%s0 + $0xc] sm:$0xf]
    %v35 = vld [vmem:[%s0 + $0x10] sm:$0xf]
    %v36 = vld [vmem:[%s0 + $0x14] sm:$0xf]
    %v37 = vld [vmem:[%s0 + $0x18] sm:$0xf]
    %v38 = vld [vmem:[%s0 + $0x1c] sm:$0xf]
    %v39 = vld [vmem:[%s0 + $0x20] sm:$0xf]
    %v40 = vld [vmem:[%s0 + $0x24] sm:$0xf]
    %v41 = vld [vmem:[%s0 + $0x28] sm:$0xf]
    %v42 = vld [vmem:[%s0 + $0x2c] sm:$0xf]
    %v43 = vld [vmem:[%s0 + $0x30] sm:$0xf]
    %v44 = vld [vmem:[%s0 + $0x34] sm:$0xf]
    %v45 = vld [vmem:[%s0 + $0x38] sm:$0xf]
    %v46 = vld [vmem:[%s0 + $0x3c] sm:$0xf]
    %v47 = vld [vmem:[%s0 + $0x40] sm:$0xf]
    %v48 = vld [vmem:[%s0 + $0x44] sm:$0xf]
    %v49 = vld [vmem:[%s0 + $0x48] sm:$0xf]
    %v50 = vld [vmem:[%s0 + $0x4c] sm:$0xf]
    %v51 = vld [vmem:[%s0 + $0x50] sm:$0xf]
    %v52 = vld [vmem:[%s0 + $0x54] sm:$0xf]
    %v53 = vld [vmem:[%s0 + $0x58] sm:$0xf]
    %v54 = vld [vmem:[%s0 + $0x5c] sm:$0xf]
    %v55 = vld [vmem:[%s0 + $0x60] sm:$0xf]
    %v56 = vld [vmem:[%s0 + $0x64] sm:$0xf]
    %v57 = vld [vmem:[%s0 + $0x68] sm:$0xf]
    %v58 = vld [vmem:[%s0 + $0x6c] sm:$0xf]
    %v59 = vld [vmem:[%s0 + $0x70] sm:$0xf]
    %v60 = vld [vmem:[%s0 + $0x74] sm:$0xf]
    %v61 = vld [vmem:[%s0 + $0x78] sm:$0xf]
    %v62 = vld [vmem:[%s0 + $0x7c] sm:$0xf]
    %v63 = vld [vmem:[%s0 + $0x80] sm:$0xf]
    %v64 = vld [vmem:[%s0 + $0x84] sm:$0xf]
    %v65 = vld [vmem:[%s0 + $0x88] sm:$0xf]
    %v66 = vld [vmem:[%s0 + $0x8c] sm:$0xf]
    %v67 = vld [vmem:[%s0 + $0x90] sm:$0xf]
    %v68 = vld [vmem:[%s0 + $0x94] sm:$0xf]
    %v69 = vld [vmem:[%s0 + $0x98] sm:$0xf]
    %v70 = vld [vmem:[%s0 + $0x9c] sm:$0xf]
    %v71 = vld [vmem:[%s0 + $0xa0] sm:$0xf]
    %v72 = vld [vmem:[%s0 + $0xa4] sm:$0xf]
    %v73 = vld [vmem:[%s0 + $0xa8] sm:$0xf]
    %v74 = vld [vmem:[%s0 + $0xac] sm:$0xf]
    %v75 = vld [vmem:[%s0 + $0xb0] sm:$0xf]
    %v76 = vld [vmem:[%s0 + $0xb4] sm:$0xf]
    %v77 = vld [vmem:[%s0 + $0xb8] sm:$0xf]
    %v78 = vld [vmem:[%s0 + $0xbc] sm:$0xf]
    %v79 = vld [vmem:[%s0 + $0xc0] sm:$0xf]
    %v80 = vld [vmem:[%s0 + $0xc4] sm:$0xf]
    %v81 = vld [vmem:[%s0 + $0xc8] sm:$0xf]
    %v82 = vld [vmem:[%s0 + $0xcc] sm:$0xf]
    %v83 = vld [vmem:[%s0 + $0xd0] sm:$0xf]
    %v84 = vld [vmem:[%s0 + $0xd4] sm:$0xf]
    %v85 = vld [vmem:[%s0 + $0xd8] sm:$0xf]
    %v86 = vld [vmem:[%s0 + $0xdc] sm:$0xf]
    %v87 = vld [vmem:[%s0 + $0xe0] sm:$0xf]
    %v88 = vld [vmem:[%s0 + $0xe4] sm:$0xf]
    %v89 = vld [vmem:[%s0 + $0xe8] sm:$0xf]
    %v90 = vld [vmem:[%s0 + $0xec] sm:$0xf]
    %v91 = vld [vmem:[%s0 + $0xf0] sm:$0xf]
    %v92 = vld [vmem:[%s0 + $0xf4] sm:$0xf]
    %v93 = vld [vmem:[%s0 + $0xf8] sm:$0xf]
    %v94 = vld [vmem:[%s0 + $0xfc] sm:$0xf]
    %v95 = vld [vmem:[%s1] sm:$0xf]
    %v96 = vld [vmem:[%s1 + $0x4] sm:$0xf]
    %v97 = vld [vmem:[%s1 + $0x8] sm:$0xf]
    %v98 = vld [vmem:[%s1 + $0xc] sm:$0xf]
    %v99 = vld [vmem:[%s1 + $0x10] sm:$0x3]
    %v100 = vld [vmem:[%s2] sm:$0x1]
    %v102 = vperm.slane %v100, 0
    %v168 = vunpack.c.l.b16 %v31
    %v169 = vunpack.c.l.b16 %v32
    %v170 = vunpack.c.l.b16 %v33
    %v171 = vunpack.c.l.b16 %v34
    %v172 = vunpack.c.l.b16 %v35
    %v173 = vunpack.c.l.b16 %v36
    %v174 = vunpack.c.l.b16 %v37
    %v175 = vunpack.c.l.b16 %v38
    %v176 = vunpack.c.l.b16 %v39
    %v177 = vunpack.c.l.b16 %v40
    %v178 = vunpack.c.l.b16 %v41
    %v179 = vunpack.c.l.b16 %v42
    %v180 = vunpack.c.l.b16 %v43
    %v181 = vunpack.c.l.b16 %v44
    %v182 = vunpack.c.l.b16 %v45
    %v183 = vunpack.c.l.b16 %v46
    %v184 = vunpack.c.l.b16 %v47
    %v185 = vunpack.c.l.b16 %v48
    %v186 = vunpack.c.l.b16 %v49
    %v187 = vunpack.c.l.b16 %v50
    %v188 = vunpack.c.l.b16 %v51
    %v189 = vunpack.c.l.b16 %v52
    %v190 = vunpack.c.l.b16 %v53
    %v191 = vunpack.c.l.b16 %v54
    %v192 = vunpack.c.l.b16 %v55
    %v193 = vunpack.c.l.b16 %v56
    %v194 = vunpack.c.l.b16 %v57
    %v195 = vunpack.c.l.b16 %v58
    %v196 = vunpack.c.l.b16 %v59
    %v197 = vunpack.c.l.b16 %v60
    %v198 = vunpack.c.l.b16 %v61
    %v199 = vunpack.c.l.b16 %v62
    %v200 = vunpack.c.l.b16 %v63
    %v201 = vunpack.c.l.b16 %v64
    %v202 = vunpack.c.l.b16 %v65
    %v203 = vunpack.c.l.b16 %v66
    %v204 = vunpack.c.l.b16 %v67
    %v205 = vunpack.c.l.b16 %v68
    %v206 = vunpack.c.l.b16 %v69
    %v207 = vunpack.c.l.b16 %v70
    %v208 = vunpack.c.l.b16 %v71
    %v209 = vunpack.c.l.b16 %v72
    %v210 = vunpack.c.l.b16 %v73
    %v211 = vunpack.c.l.b16 %v74
    %v212 = vunpack.c.l.b16 %v75
    %v213 = vunpack.c.l.b16 %v76
    %v214 = vunpack.c.l.b16 %v77
    %v215 = vunpack.c.l.b16 %v78
    %v216 = vunpack.c.l.b16 %v79
    %v217 = vunpack.c.l.b16 %v80
    %v218 = vunpack.c.l.b16 %v81
    %v219 = vunpack.c.l.b16 %v82
    %v220 = vunpack.c.l.b16 %v83
    %v221 = vunpack.c.l.b16 %v84
    %v222 = vunpack.c.l.b16 %v85
    %v223 = vunpack.c.l.b16 %v86
    %v224 = vunpack.c.l.b16 %v87
    %v225 = vunpack.c.l.b16 %v88
    %v226 = vunpack.c.l.b16 %v89
    %v227 = vunpack.c.l.b16 %v90
    %v228 = vunpack.c.l.b16 %v91
    %v229 = vunpack.c.l.b16 %v92
    %v230 = vunpack.c.l.b16 %v93
    %v231 = vunpack.c.l.b16 %v94
    %v232 = vpack.c.b16 %v169, %v168
    %v233 = vpack.c.b16 %v171, %v170
    %v234 = vpack.c.b16 %v173, %v172
    %v235 = vpack.c.b16 %v175, %v174
    %v236 = vpack.c.b16 %v177, %v176
    %v237 = vpack.c.b16 %v179, %v178
    %v238 = vpack.c.b16 %v181, %v180
    %v239 = vpack.c.b16 %v183, %v182
    %v240 = vpack.c.b16 %v185, %v184
    %v241 = vpack.c.b16 %v187, %v186
    %v242 = vpack.c.b16 %v189, %v188
    %v243 = vpack.c.b16 %v191, %v190
    %v244 = vpack.c.b16 %v193, %v192
    %v245 = vpack.c.b16 %v195, %v194
    %v246 = vpack.c.b16 %v197, %v196
    %v247 = vpack.c.b16 %v199, %v198
    %v248 = vpack.c.b16 %v201, %v200
    %v249 = vpack.c.b16 %v203, %v202
    %v250 = vpack.c.b16 %v205, %v204
    %v251 = vpack.c.b16 %v207, %v206
    %v252 = vpack.c.b16 %v209, %v208
    %v253 = vpack.c.b16 %v211, %v210
    %v254 = vpack.c.b16 %v213, %v212
    %v255 = vpack.c.b16 %v215, %v214
    %v256 = vpack.c.b16 %v217, %v216
    %v257 = vpack.c.b16 %v219, %v218
    %v258 = vpack.c.b16 %v221, %v220
    %v259 = vpack.c.b16 %v223, %v222
    %v260 = vpack.c.b16 %v225, %v224
    %v261 = vpack.c.b16 %v227, %v226
    %v262 = vpack.c.b16 %v229, %v228
    %v263 = vpack.c.b16 %v231, %v230
    %v269 = vunpack.c.l.b16 %v95
    %v270 = vunpack.c.l.b16 %v96
    %v271 = vunpack.c.l.b16 %v97
    %v272 = vunpack.c.l.b16 %v98
    %v273 = vunpack.c.l.b16 %v99
    %v274 = vpack.c.b16 %v270, %v269
    %v275 = vpack.c.b16 %v272, %v271
    %v276 = vpack.c.b16 %v273, %v273
    %vm279 = vcmask 293888
    %v281 = vsel %vm279, %v232, 0
    %v284 = vsel %vm279, %v233, 0
    %v287 = vsel %vm279, %v234, 0
    %v290 = vsel %vm279, %v235, 0
    %v293 = vsel %vm279, %v236, 0
    %v296 = vsel %vm279, %v237, 0
    %v299 = vsel %vm279, %v238, 0
    %v302 = vsel %vm279, %v239, 0
    %v305 = vsel %vm279, %v240, 0
    %v308 = vsel %vm279, %v241, 0
    %v311 = vsel %vm279, %v242, 0
    %v314 = vsel %vm279, %v243, 0
    %v317 = vsel %vm279, %v244, 0
    %v320 = vsel %vm279, %v245, 0
    %v323 = vsel %vm279, %v246, 0
    %v326 = vsel %vm279, %v247, 0
    %v329 = vsel %vm279, %v248, 0
    %v332 = vsel %vm279, %v249, 0
    %v335 = vsel %vm279, %v250, 0
    %v338 = vsel %vm279, %v251, 0
    %v341 = vsel %vm279, %v252, 0
    %v344 = vsel %vm279, %v253, 0
    %v347 = vsel %vm279, %v254, 0
    %v350 = vsel %vm279, %v255, 0
    %v353 = vsel %vm279, %v256, 0
    %v356 = vsel %vm279, %v257, 0
    %v359 = vsel %vm279, %v258, 0
    %v362 = vsel %vm279, %v259, 0
    %v365 = vsel %vm279, %v260, 0
    %v368 = vsel %vm279, %v261, 0
    %v371 = vsel %vm279, %v262, 0
    %v374 = vsel %vm279, %v263, 0
    %vm376 = vcmask 1041408
    %v378 = vsel %vm376, %v276, 0
    %380 = vmatpush.bf16.msra.mxu0 0
    %381 = vmatpush.bf16.msra.mxu0 0
    %382 = vmatpush.bf16.msra.mxu0 0
    %383 = vmatpush.bf16.msra.mxu0 0
    %384 = vmatpush.bf16.msra.mxu0 0
    %385 = vmatpush.bf16.msra.mxu0 %v378
    %386 = vmatpush.bf16.msra.mxu0 %v275
    %387 = vmatpush.bf16.msra.mxu0 %v274
    %388 = vmatmul.bf16.gmra.mxu0 %v281
    %v389 = vpop.f32.mrf.mxu0
    %v390 = vadd.f32 %v102, %v389
    %v391 = vpop.f32.mrf.mxu0
    %v392 = vadd.f32 %v102, %v391
    %393 = vmatmul.bf16.gmra.mxu0 %v284
    %v394 = vpop.f32.mrf.mxu0
    %v395 = vadd.f32 %v102, %v394
    %v396 = vpop.f32.mrf.mxu0
    %v397 = vadd.f32 %v102, %v396
    %398 = vmatmul.bf16.gmra.mxu0 %v287
    %v399 = vpop.f32.mrf.mxu0
    %v400 = vadd.f32 %v102, %v399
    %v401 = vpop.f32.mrf.mxu0
    %v402 = vadd.f32 %v102, %v401
    %403 = vmatmul.bf16.gmra.mxu0 %v290
    %v404 = vpop.f32.mrf.mxu0
    %v405 = vadd.f32 %v102, %v404
    %v406 = vpop.f32.mrf.mxu0
    %v407 = vadd.f32 %v102, %v406
    %408 = vmatmul.bf16.gmra.mxu0 %v293
    %v409 = vpop.f32.mrf.mxu0
    %v410 = vadd.f32 %v102, %v409
    %v411 = vpop.f32.mrf.mxu0
    %v412 = vadd.f32 %v102, %v411
    %413 = vmatmul.bf16.gmra.mxu0 %v296
    %v414 = vpop.f32.mrf.mxu0
    %v415 = vadd.f32 %v102, %v414
    %v416 = vpop.f32.mrf.mxu0
    %v417 = vadd.f32 %v102, %v416
    %418 = vmatmul.bf16.gmra.mxu0 %v299
    %v419 = vpop.f32.mrf.mxu0
    %v420 = vadd.f32 %v102, %v419
    %v421 = vpop.f32.mrf.mxu0
    %v422 = vadd.f32 %v102, %v421
    %423 = vmatmul.bf16.gmra.mxu0 %v302
    %v424 = vpop.f32.mrf.mxu0
    %v425 = vadd.f32 %v102, %v424
    %v426 = vpop.f32.mrf.mxu0
    %v427 = vadd.f32 %v102, %v426
    %428 = vmatmul.bf16.gmra.mxu0 %v305
    %v429 = vpop.f32.mrf.mxu0
    %v430 = vadd.f32 %v102, %v429
    %v431 = vpop.f32.mrf.mxu0
    %v432 = vadd.f32 %v102, %v431
    %433 = vmatmul.bf16.gmra.mxu0 %v308
    %v434 = vpop.f32.mrf.mxu0
    %v435 = vadd.f32 %v102, %v434
    %v436 = vpop.f32.mrf.mxu0
    %v437 = vadd.f32 %v102, %v436
    %438 = vmatmul.bf16.gmra.mxu0 %v311
    %v439 = vpop.f32.mrf.mxu0
    %v440 = vadd.f32 %v102, %v439
    %v441 = vpop.f32.mrf.mxu0
    %v442 = vadd.f32 %v102, %v441
    %443 = vmatmul.bf16.gmra.mxu0 %v314
    %v444 = vpop.f32.mrf.mxu0
    %v445 = vadd.f32 %v102, %v444
    %v446 = vpop.f32.mrf.mxu0
    %v447 = vadd.f32 %v102, %v446
    %448 = vmatmul.bf16.gmra.mxu0 %v317
    %v449 = vpop.f32.mrf.mxu0
    %v450 = vadd.f32 %v102, %v449
    %v451 = vpop.f32.mrf.mxu0
    %v452 = vadd.f32 %v102, %v451
    %453 = vmatmul.bf16.gmra.mxu0 %v320
    %v454 = vpop.f32.mrf.mxu0
    %v455 = vadd.f32 %v102, %v454
    %v456 = vpop.f32.mrf.mxu0
    %v457 = vadd.f32 %v102, %v456
    %458 = vmatmul.bf16.gmra.mxu0 %v323
    %v459 = vpop.f32.mrf.mxu0
    %v460 = vadd.f32 %v102, %v459
    %v461 = vpop.f32.mrf.mxu0
    %v462 = vadd.f32 %v102, %v461
    %463 = vmatmul.bf16.gmra.mxu0 %v326
    %v464 = vpop.f32.mrf.mxu0
    %v465 = vadd.f32 %v102, %v464
    %v466 = vpop.f32.mrf.mxu0
    %v467 = vadd.f32 %v102, %v466
    %468 = vmatmul.bf16.gmra.mxu0 %v329
    %v469 = vpop.f32.mrf.mxu0
    %v470 = vadd.f32 %v102, %v469
    %v471 = vpop.f32.mrf.mxu0
    %v472 = vadd.f32 %v102, %v471
    %473 = vmatmul.bf16.gmra.mxu0 %v332
    %v474 = vpop.f32.mrf.mxu0
    %v475 = vadd.f32 %v102, %v474
    %v476 = vpop.f32.mrf.mxu0
    %v477 = vadd.f32 %v102, %v476
    %478 = vmatmul.bf16.gmra.mxu0 %v335
    %v479 = vpop.f32.mrf.mxu0
    %v480 = vadd.f32 %v102, %v479
    %v481 = vpop.f32.mrf.mxu0
    %v482 = vadd.f32 %v102, %v481
    %483 = vmatmul.bf16.gmra.mxu0 %v338
    %v484 = vpop.f32.mrf.mxu0
    %v485 = vadd.f32 %v102, %v484
    %v486 = vpop.f32.mrf.mxu0
    %v487 = vadd.f32 %v102, %v486
    %488 = vmatmul.bf16.gmra.mxu0 %v341
    %v489 = vpop.f32.mrf.mxu0
    %v490 = vadd.f32 %v102, %v489
    %v491 = vpop.f32.mrf.mxu0
    %v492 = vadd.f32 %v102, %v491
    %493 = vmatmul.bf16.gmra.mxu0 %v344
    %v494 = vpop.f32.mrf.mxu0
    %v495 = vadd.f32 %v102, %v494
    %v496 = vpop.f32.mrf.mxu0
    %v497 = vadd.f32 %v102, %v496
    %498 = vmatmul.bf16.gmra.mxu0 %v347
    %v499 = vpop.f32.mrf.mxu0
    %v500 = vadd.f32 %v102, %v499
    %v501 = vpop.f32.mrf.mxu0
    %v502 = vadd.f32 %v102, %v501
    %503 = vmatmul.bf16.gmra.mxu0 %v350
    %v504 = vpop.f32.mrf.mxu0
    %v505 = vadd.f32 %v102, %v504
    %v506 = vpop.f32.mrf.mxu0
    %v507 = vadd.f32 %v102, %v506
    %508 = vmatmul.bf16.gmra.mxu0 %v353
    %v509 = vpop.f32.mrf.mxu0
    %v510 = vadd.f32 %v102, %v509
    %v511 = vpop.f32.mrf.mxu0
    %v512 = vadd.f32 %v102, %v511
    %513 = vmatmul.bf16.gmra.mxu0 %v356
    %v514 = vpop.f32.mrf.mxu0
    %v515 = vadd.f32 %v102, %v514
    %v516 = vpop.f32.mrf.mxu0
    %v517 = vadd.f32 %v102, %v516
    %518 = vmatmul.bf16.gmra.mxu0 %v359
    %v519 = vpop.f32.mrf.mxu0
    %v520 = vadd.f32 %v102, %v519
    %v521 = vpop.f32.mrf.mxu0
    %v522 = vadd.f32 %v102, %v521
    %523 = vmatmul.bf16.gmra.mxu0 %v362
    %v524 = vpop.f32.mrf.mxu0
    %v525 = vadd.f32 %v102, %v524
    %v526 = vpop.f32.mrf.mxu0
    %v527 = vadd.f32 %v102, %v526
    %528 = vmatmul.bf16.gmra.mxu0 %v365
    %v529 = vpop.f32.mrf.mxu0
    %v530 = vadd.f32 %v102, %v529
    %v531 = vpop.f32.mrf.mxu0
    %v532 = vadd.f32 %v102, %v531
    %533 = vmatmul.bf16.gmra.mxu0 %v368
    %v534 = vpop.f32.mrf.mxu0
    %v535 = vadd.f32 %v102, %v534
    %v536 = vpop.f32.mrf.mxu0
    %v537 = vadd.f32 %v102, %v536
    %538 = vmatmul.bf16.gmra.mxu0 %v371
    %v539 = vpop.f32.mrf.mxu0
    %v540 = vadd.f32 %v102, %v539
    %v541 = vpop.f32.mrf.mxu0
    %v542 = vadd.f32 %v102, %v541
    %543 = vmatmul.bf16.gmra.mxu0 %v374
    %v544 = vpop.f32.mrf.mxu0
    %v545 = vadd.f32 %v102, %v544
    %v546 = vpop.f32.mrf.mxu0
    %v547 = vadd.f32 %v102, %v546
    %548 = vdwg.mxu0
    %v549 = vmax.f32 %v390, 0.0
    %v550 = vmax.f32 %v392, 0.0
    %v551 = vmax.f32 %v395, 0.0
    %v552 = vmax.f32 %v397, 0.0
    %v553 = vmax.f32 %v400, 0.0
    %v554 = vmax.f32 %v402, 0.0
    %v555 = vmax.f32 %v405, 0.0
    %v556 = vmax.f32 %v407, 0.0
    %v557 = vmax.f32 %v410, 0.0
    %v558 = vmax.f32 %v412, 0.0
    %v559 = vmax.f32 %v415, 0.0
    %v560 = vmax.f32 %v417, 0.0
    %v561 = vmax.f32 %v420, 0.0
    %v562 = vmax.f32 %v422, 0.0
    %v563 = vmax.f32 %v425, 0.0
    %v564 = vmax.f32 %v427, 0.0
    %v565 = vmax.f32 %v430, 0.0
    %v566 = vmax.f32 %v432, 0.0
    %v567 = vmax.f32 %v435, 0.0
    %v568 = vmax.f32 %v437, 0.0
    %v569 = vmax.f32 %v440, 0.0
    %v570 = vmax.f32 %v442, 0.0
    %v571 = vmax.f32 %v445, 0.0
    %v572 = vmax.f32 %v447, 0.0
    %v573 = vmax.f32 %v450, 0.0
    %v574 = vmax.f32 %v452, 0.0
    %v575 = vmax.f32 %v455, 0.0
    %v576 = vmax.f32 %v457, 0.0
    %v577 = vmax.f32 %v460, 0.0
    %v578 = vmax.f32 %v462, 0.0
    %v579 = vmax.f32 %v465, 0.0
    %v580 = vmax.f32 %v467, 0.0
    %v581 = vmax.f32 %v470, 0.0
    %v582 = vmax.f32 %v472, 0.0
    %v583 = vmax.f32 %v475, 0.0
    %v584 = vmax.f32 %v477, 0.0
    %v585 = vmax.f32 %v480, 0.0
    %v586 = vmax.f32 %v482, 0.0
    %v587 = vmax.f32 %v485, 0.0
    %v588 = vmax.f32 %v487, 0.0
    %v589 = vmax.f32 %v490, 0.0
    %v590 = vmax.f32 %v492, 0.0
    %v591 = vmax.f32 %v495, 0.0
    %v592 = vmax.f32 %v497, 0.0
    %v593 = vmax.f32 %v500, 0.0
    %v594 = vmax.f32 %v502, 0.0
    %v595 = vmax.f32 %v505, 0.0
    %v596 = vmax.f32 %v507, 0.0
    %v597 = vmax.f32 %v510, 0.0
    %v598 = vmax.f32 %v512, 0.0
    %v599 = vmax.f32 %v515, 0.0
    %v600 = vmax.f32 %v517, 0.0
    %v601 = vmax.f32 %v520, 0.0
    %v602 = vmax.f32 %v522, 0.0
    %v603 = vmax.f32 %v525, 0.0
    %v604 = vmax.f32 %v527, 0.0
    %v605 = vmax.f32 %v530, 0.0
    %v606 = vmax.f32 %v532, 0.0
    %v607 = vmax.f32 %v535, 0.0
    %v608 = vmax.f32 %v537, 0.0
    %v609 = vmax.f32 %v540, 0.0
    %v610 = vmax.f32 %v542, 0.0
    %v611 = vmax.f32 %v545, 0.0
    %v612 = vmax.f32 %v547, 0.0
    %v613 = vld [vmem:[%s3] sm:$0xff]
    %615 = vst [vmem:[#allocation1] ss:$4 sm:$0xff] %v613
    %v616 = vld.sshfl [vmem:[#allocation1] sm:$0xff pattern:$0x73625140]
    %v617 = vld.sshfl [vmem:[#allocation1 + $0x8] sm:$0xff pattern:$0x73625140]
    %v618 = vld.sshfl [vmem:[#allocation1 + $0x10] sm:$0xff pattern:$0x73625140]
    %v619 = vld.sshfl [vmem:[#allocation1 + $0x18] sm:$0xff pattern:$0x73625140]
    %624 = vmatpush.msra.mxu0 %v564
    %625 = vmatpush.msra.mxu0 %v563
    %626 = vmatpush.msra.mxu0 %v562
    %627 = vmatpush.msra.mxu0 %v561
    %628 = vmatpush.msra.mxu0 %v560
    %629 = vmatpush.msra.mxu0 %v559
    %630 = vmatpush.msra.mxu0 %v558
    %631 = vmatpush.msra.mxu0 %v557
    %632 = vmatpush.msra.mxu0 %v556
    %633 = vmatpush.msra.mxu0 %v555
    %634 = vmatpush.msra.mxu0 %v554
    %635 = vmatpush.msra.mxu0 %v553
    %636 = vmatpush.msra.mxu0 %v552
    %637 = vmatpush.msra.mxu0 %v551
    %638 = vmatpush.msra.mxu0 %v550
    %639 = vmatpush.msra.mxu0 %v549
    %640 = vmatmul.f32.gmra.mxu0 %v616
    %v641 = vpop.f32.mrf.mxu0
    %v642 = vadd.f32 0.0, %v641
    %643 = vdwg.mxu0
    %644 = vmatpush.msra.mxu0 %v580
    %645 = vmatpush.msra.mxu0 %v579
    %646 = vmatpush.msra.mxu0 %v578
    %647 = vmatpush.msra.mxu0 %v577
    %648 = vmatpush.msra.mxu0 %v576
    %649 = vmatpush.msra.mxu0 %v575
    %650 = vmatpush.msra.mxu0 %v574
    %651 = vmatpush.msra.mxu0 %v573
    %652 = vmatpush.msra.mxu0 %v572
    %653 = vmatpush.msra.mxu0 %v571
    %654 = vmatpush.msra.mxu0 %v570
    %655 = vmatpush.msra.mxu0 %v569
    %656 = vmatpush.msra.mxu0 %v568
    %657 = vmatpush.msra.mxu0 %v567
    %658 = vmatpush.msra.mxu0 %v566
    %659 = vmatpush.msra.mxu0 %v565
    %660 = vmatmul.f32.gmra.mxu0 %v617
    %v661 = vpop.f32.mrf.mxu0
    %v662 = vadd.f32 %v642, %v661
    %663 = vdwg.mxu0
    %664 = vmatpush.msra.mxu0 %v596
    %665 = vmatpush.msra.mxu0 %v595
    %666 = vmatpush.msra.mxu0 %v594
    %667 = vmatpush.msra.mxu0 %v593
    %668 = vmatpush.msra.mxu0 %v592
    %669 = vmatpush.msra.mxu0 %v591
    %670 = vmatpush.msra.mxu0 %v590
    %671 = vmatpush.msra.mxu0 %v589
    %672 = vmatpush.msra.mxu0 %v588
    %673 = vmatpush.msra.mxu0 %v587
    %674 = vmatpush.msra.mxu0 %v586
    %675 = vmatpush.msra.mxu0 %v585
    %676 = vmatpush.msra.mxu0 %v584
    %677 = vmatpush.msra.mxu0 %v583
    %678 = vmatpush.msra.mxu0 %v582
    %679 = vmatpush.msra.mxu0 %v581
    %680 = vmatmul.f32.gmra.mxu0 %v618
    %v681 = vpop.f32.mrf.mxu0
    %v682 = vadd.f32 %v662, %v681
    %683 = vdwg.mxu0
    %684 = vmatpush.msra.mxu0 %v612
    %685 = vmatpush.msra.mxu0 %v611
    %686 = vmatpush.msra.mxu0 %v610
    %687 = vmatpush.msra.mxu0 %v609
    %688 = vmatpush.msra.mxu0 %v608
    %689 = vmatpush.msra.mxu0 %v607
    %690 = vmatpush.msra.mxu0 %v606
    %691 = vmatpush.msra.mxu0 %v605
    %692 = vmatpush.msra.mxu0 %v604
    %693 = vmatpush.msra.mxu0 %v603
    %694 = vmatpush.msra.mxu0 %v602
    %695 = vmatpush.msra.mxu0 %v601
    %696 = vmatpush.msra.mxu0 %v600
    %697 = vmatpush.msra.mxu0 %v599
    %698 = vmatpush.msra.mxu0 %v598
    %699 = vmatpush.msra.mxu0 %v597
    %700 = vmatmul.f32.gmra.mxu0 %v619
    %v701 = vpop.f32.mrf.mxu0
    %v702 = vadd.f32 %v682, %v701
    %703 = vdwg.mxu0
    %v704 = vpack.c.bf16 %v702, %v702
    %v705 = vld [vmem:[%s4] sm:$0xf]
    %v706 = vld [vmem:[%s4 + $0x4] sm:$0xf]
    %v707 = vld [vmem:[%s4 + $0x8] sm:$0xf]
    %v708 = vld [vmem:[%s4 + $0xc] sm:$0xf]
    %v709 = vld [vmem:[%s5] sm:$0x1]
    %v711 = vperm.slane %v709, 0
    %v717 = vunpack.c.l.b16 %v705
    %v718 = vunpack.c.l.b16 %v706
    %v719 = vunpack.c.l.b16 %v707
    %v720 = vunpack.c.l.b16 %v708
    %v721 = vpack.c.b16 %v718, %v717
    %v722 = vpack.c.b16 %v720, %v719
    %vm725 = vcmask 261120
    %v727 = vsel %vm725, %v704, 0
    %729 = vmatpush.bf16.msra.mxu0 0
    %730 = vmatpush.bf16.msra.mxu0 0
    %731 = vmatpush.bf16.msra.mxu0 0
    %732 = vmatpush.bf16.msra.mxu0 0
    %733 = vmatpush.bf16.msra.mxu0 0
    %734 = vmatpush.bf16.msra.mxu0 0
    %735 = vmatpush.bf16.msra.mxu0 %v722
    %736 = vmatpush.bf16.msra.mxu0 %v721
    %737 = vmatmul.bf16.gmra.mxu0 %v727
    %v738 = vpop.f32.mrf.mxu0
    %v739 = vadd.f32 %v711, %v738
    %v740 = vpop.f32.mrf.mxu0
    %741 = vdwg.mxu0
    %v742 = vmax.f32 %v739, 0.0
    %v743 = vpack.c.bf16 %v742, %v742
    %v744 = vld [vmem:[%s6] sm:$0xf]
    %v745 = vld [vmem:[%s6 + $0x4] sm:$0xf]
    %v746 = vld [vmem:[%s6 + $0x8] sm:$0xf]
    %v747 = vld [vmem:[%s6 + $0xc] sm:$0xf]
    %v748 = vld [vmem:[%s6 + $0x10] sm:$0xf]
    %v749 = vld [vmem:[%s6 + $0x14] sm:$0xf]
    %v750 = vld [vmem:[%s6 + $0x18] sm:$0xf]
    %v751 = vld [vmem:[%s6 + $0x1c] sm:$0xf]
    %v752 = vld [vmem:[%s7] sm:$0x1]
    %v754 = vperm.slane %v752, 0
    %v764 = vunpack.c.l.b16 %v744
    %v765 = vunpack.c.l.b16 %v745
    %v766 = vunpack.c.l.b16 %v746
    %v767 = vunpack.c.l.b16 %v747
    %v768 = vunpack.c.l.b16 %v748
    %v769 = vunpack.c.l.b16 %v749
    %v770 = vunpack.c.l.b16 %v750
    %v771 = vunpack.c.l.b16 %v751
    %v772 = vpack.c.b16 %v765, %v764
    %v773 = vpack.c.b16 %v767, %v766
    %v774 = vpack.c.b16 %v769, %v768
    %v775 = vpack.c.b16 %v771, %v770
    %vm780 = vcmask 523264
    %v782 = vsel %vm780, %v743, 0
    %784 = vmatpush.bf16.msra.mxu0 0
    %785 = vmatpush.bf16.msra.mxu0 0
    %786 = vmatpush.bf16.msra.mxu0 0
    %787 = vmatpush.bf16.msra.mxu0 0
    %788 = vmatpush.bf16.msra.mxu0 %v775
    %789 = vmatpush.bf16.msra.mxu0 %v774
    %790 = vmatpush.bf16.msra.mxu0 %v773
    %791 = vmatpush.bf16.msra.mxu0 %v772
    %792 = vmatmul.bf16.gmra.mxu0 %v782
    %v793 = vpop.f32.mrf.mxu0
    %v794 = vadd.f32 %v754, %v793
    %v795 = vpop.f32.mrf.mxu0
    %796 = vdwg.mxu0
    %vm797 = vcmask 254976
    %798 = vst.msk [vmem:[#allocation2] sm:$0x3] %vm797, %v794
    // Predicated region
    $region34: #{simsiam_encoder_forward.1} parent=1 // pred_check
      _
    $region35: #{simsiam_encoder_forward.1} parent=1 // pred_check_branch
      %800 = sbr.rel (0) target = $region37
    $region36: #{simsiam_encoder_forward.1} parent=1 // pred_region
      %802 = vsyncadd [#allocation3], 0
      %s804 = sshll.u32 [#allocation2], 4
      %s805 = int_to_ptr.vmem [resolvable:$true] %s804
      %s806 = sshll.u32 %s8, 4
      %s807 = int_to_ptr.hbm [resolvable:$true] %s806
      %809 = dma.vmem_to_hbm [thread:$0]  %s805, 32, %s807, [#allocation3]
    $region37: #{simsiam_encoder_forward.1} parent=1 // pred_fallthru
      _
    // Predicated region
    $region38: #{simsiam_encoder_forward.1} parent=1 // pred_check
      _
    $region39: #{simsiam_encoder_forward.1} parent=1 // pred_check_branch
      %811 = sbr.rel (0) target = $region41
    $region40: #{simsiam_encoder_forward.1} parent=1 // pred_region
      %813 = dma.done [#allocation3], 32
    $region41: #{simsiam_encoder_forward.1} parent=1 // pred_fallthru
      _
    %814 = vsyncpa [#allocation3], 1

</llo_original>
